<compile_context>
chip_gen: v7x
topology: tpu7x:2x2x1
jax: 0.10.0
libtpu: 0.0.40
codegen_flags: <defaults>
</compile_context>

<pallas_src>
import jax
import jax.numpy as jnp
from jax.experimental import pallas as pl
from jax.experimental.pallas import tpu as pltpu


def _round_up(n, m):
    return ((n + m - 1) // m) * m


def _proj_kernel_single(x_ref, w_ref, b_ref, o_ref):
    # x_ref : (TM, TK) bf16   w_ref : (TK, TN) bf16 (pre-transposed weight)
    # b_ref : (1,  TN) f32    o_ref : (TM, TN)
    o_ref[...] = (
        jnp.dot(x_ref[...], w_ref[...], preferred_element_type=jnp.float32)
        + b_ref[...]
    ).astype(o_ref.dtype)


def _proj_kernel_kloop(x_ref, w_ref, b_ref, o_ref, acc_ref):
    # Same as above but with a K (reduction) grid axis; acc_ref is an f32
    # accumulator resident across the K axis.
    k = pl.program_id(2)
    prod = jnp.dot(x_ref[...], w_ref[...], preferred_element_type=jnp.float32)

    @pl.when(k == 0)
    def _():
        acc_ref[...] = prod          # direct assign: no zero-init store + reload

    @pl.when(k > 0)
    def _():
        acc_ref[...] += prod

    @pl.when(k == pl.num_programs(2) - 1)
    def _():
        o_ref[...] = (acc_ref[...] + b_ref[...]).astype(o_ref.dtype)


def prepare_projection_params(weight, bias, *, compute_dtype=jnp.bfloat16):
    """One-time parameter prep (do NOT call per forward).

    weight : (vocab, d_model)  PyTorch nn.Linear layout
    bias   : (vocab,)
    Returns (w_t, b2d) with w_t (d_model, vocab) in the MXU compute dtype and
    b2d (1, vocab) f32.  Amortizes the transpose / cast HBM traffic to zero.
    """
    w_t = jnp.asarray(weight).T.astype(compute_dtype)
    b2d = jnp.asarray(bias).astype(jnp.float32).reshape(1, -1)
    return w_t, b2d


def projection_forward(x, w_t, b2d, *, tile_m=512, tile_n=1024, tile_k=2048,
                       out_dtype=None, vmem_budget_bytes=40 << 20):
    """Forward of nn.Linear(d_model, vocab): x @ W.T + b.

    x   : (batch, seq, d_model)
    w_t : (d_model, vocab)  -- pre-transposed weight from prepare_projection_params
    b2d : (1, vocab) f32
    """
    batch, seq, d_model = x.shape
    d_model_w, vocab = w_t.shape
    assert d_model_w == d_model
    assert b2d.shape == (1, vocab)

    compute_dtype = w_t.dtype
    if out_dtype is None:
        # Matches nn.Linear semantics (f32 in -> f32 logits).  Pass bf16 here to
        # halve output HBM writeback for prefill-sized M.
        out_dtype = x.dtype

    M = batch * seq
    cbytes = jnp.dtype(compute_dtype).itemsize
    obytes = jnp.dtype(out_dtype).itemsize
    sub = 16 if cbytes < 4 else 8

    # Clamp tiles to (rounded-up) problem sizes.
    tile_m = min(tile_m, _round_up(M, sub))
    tile_n = min(tile_n, _round_up(vocab, 128))
    tile_k = min(tile_k, _round_up(d_model, 128))

    def footprint(tm, tn, tk):
        k_steps = _round_up(d_model, tk) // tk
        acc = tm * tn * 4 if k_steps > 1 else 0
        return (2 * tm * tk * cbytes        # x tile, double-buffered
                + 2 * tk * tn * cbytes      # weight tile, double-buffered
                + 2 * tm * tn * obytes      # output tile, double-buffered
                + 2 * tn * 4                # bias tile
                + acc)                      # f32 accumulator scratch

    # Keep tiles inside a conservative VMEM budget (v7x only has 64 MiB physical).
    while footprint(tile_m, tile_n, tile_k) > vmem_budget_bytes and tile_k > 512:
        tile_k //= 2
    while footprint(tile_m, tile_n, tile_k) > vmem_budget_bytes and tile_m > 256:
        tile_m //= 2

    Mp = _round_up(M, tile_m)
    Np = _round_up(vocab, tile_n)
    Kp = _round_up(d_model, tile_k)

    # v7x has 2 TensorCores: make sure the parallel grid has >= 2 steps, split on
    # the vocab axis so each core streams a disjoint half of the weight.
    if (Np // tile_n) * (Mp // tile_m) < 2 and tile_n > 128:
        tile_n = max(128, _round_up(tile_n // 2, 128))
        Np = _round_up(vocab, tile_n)

    k_steps = Kp // tile_k

    x2d = x.reshape(M, d_model).astype(compute_dtype)
    w = w_t
    b = b2d
    if (Mp, Kp) != (M, d_model):
        x2d = jnp.pad(x2d, ((0, Mp - M), (0, Kp - d_model)))
    if (Kp, Np) != (d_model, vocab):
        # TODO(synk): for ragged vocab/d_model, pre-pad the weight once in
        # prepare_projection_params instead of paying this per call.
        w = jnp.pad(w, ((0, Kp - d_model), (0, Np - vocab)))
    if Np != vocab:
        b = jnp.pad(b, ((0, 0), (0, Np - vocab)))

    vmem_bytes = footprint(tile_m, tile_n, tile_k)
    vmem_limit = min(int(vmem_bytes * 5 // 4) + (2 << 20), 56 << 20)

    if k_steps == 1:
        # Fast path: whole reduction in one dot, no accumulator scratch.
        grid = (Np // tile_n, Mp // tile_m)
        grid_spec = pltpu.PrefetchScalarGridSpec(
            num_scalar_prefetch=0,
            grid=grid,
            in_specs=[
                pl.BlockSpec((tile_m, tile_k), lambda j, i: (i, 0)),
                pl.BlockSpec((tile_k, tile_n), lambda j, i: (0, j)),
                pl.BlockSpec((1, tile_n), lambda j, i: (0, j)),
            ],
            out_specs=pl.BlockSpec((tile_m, tile_n), lambda j, i: (i, j)),
        )
        kernel = _proj_kernel_single
        dims = ("parallel", "parallel")
    else:
        # Vocab outermost, M in the middle, K (reduction) innermost/"arbitrary".
        grid = (Np // tile_n, Mp // tile_m, k_steps)
        grid_spec = pltpu.PrefetchScalarGridSpec(
            num_scalar_prefetch=0,
            grid=grid,
            in_specs=[
                pl.BlockSpec((tile_m, tile_k), lambda j, i, k: (i, k)),
                pl.BlockSpec((tile_k, tile_n), lambda j, i, k: (k, j)),
                pl.BlockSpec((1, tile_n), lambda j, i, k: (0, j)),
            ],
            out_specs=pl.BlockSpec((tile_m, tile_n), lambda j, i, k: (i, j)),
            scratch_shapes=[pltpu.VMEM((tile_m, tile_n), jnp.float32)],
        )
        kernel = _proj_kernel_kloop
        dims = ("parallel", "parallel", "arbitrary")

    out2d = pl.pallas_call(
        kernel,
        out_shape=jax.ShapeDtypeStruct((Mp, Np), out_dtype),
        grid_spec=grid_spec,
        compiler_params=pltpu.CompilerParams(
            dimension_semantics=dims,
            vmem_limit_bytes=vmem_limit,
        ),
    )(x2d, w, b)

    if (Mp, Np) != (M, vocab):
        out2d = out2d[:M, :vocab]
    return out2d.reshape(batch, seq, vocab)


if __name__ == "__main__":
    # Small shapes implied by the module: (batch, seq, d_model) -> (batch, seq, vocab)
    batch, seq, d_model, vocab = 2, 64, 256, 512

    key = jax.random.PRNGKey(0)
    kx, kw, kb = jax.random.split(key, 3)

    x = jax.random.normal(kx, (batch, seq, d_model), dtype=jnp.float32)
    # Deterministic init mimicking nn.Linear's uniform(-1/sqrt(d_model), 1/sqrt(d_model))
    bound = 1.0 / (d_model ** 0.5)
    weight = jax.random.uniform(kw, (vocab, d_model), minval=-bound, maxval=bound,
                                dtype=jnp.float32)
    bias = jax.random.uniform(kb, (vocab,), minval=-bound, maxval=bound,
                              dtype=jnp.float32)

    # One-time parameter prep (transpose to MXU layout + bf16 cast) — kept out of
    # the per-call path.
    w_t, b2d = prepare_projection_params(weight, bias)

    # Default (large) tiles: single-K fast path, vocab split over >= 2 parallel tiles.
    out = projection_forward(x, w_t, b2d)
    out = jax.block_until_ready(out)
    assert out.shape == (batch, seq, vocab)

    # Small tiles: exercises the 3-D grid + f32 accumulator K-loop path.
    out_small = projection_forward(x, w_t, b2d, tile_m=64, tile_n=128, tile_k=128)
    out_small = jax.block_until_ready(out_small)
    assert out_small.shape == (batch, seq, vocab)

    # Reference with the same bf16 input rounding (f32 accumulation), tight tol.
    xr = x.astype(jnp.bfloat16).astype(jnp.float32)
    wr = weight.astype(jnp.bfloat16).astype(jnp.float32)
    ref_bf16 = xr @ wr.T + bias
    assert jnp.allclose(out, ref_bf16, atol=1e-3, rtol=1e-3)
    assert jnp.allclose(out_small, ref_bf16, atol=1e-3, rtol=1e-3)

    # Loose sanity check against the pure-f32 reference.
    ref_f32 = x @ weight.T + bias
    assert jnp.allclose(out, ref_f32, atol=5e-2, rtol=5e-2)

    print("KERNEL_OK")
</pallas_src>

<mosaic_0001>
module attributes {stable_mosaic.version = 11 : i64} {
  func.func @_proj_kernel_single(%arg0: i32, %arg1: i32, %arg2: memref<128x256xbf16, #tpu.memory_space<vmem>>, %arg3: memref<256x256xbf16, #tpu.memory_space<vmem>>, %arg4: memref<1x256xf32, #tpu.memory_space<vmem>>, %arg5: memref<128x256xf32, #tpu.memory_space<vmem>>) attributes {dimension_semantics = [#tpu.dimension_semantics<parallel>, #tpu.dimension_semantics<parallel>], iteration_bounds = array<i64: 2, 1>, scalar_prefetch = 0 : i64, scratch_operands = 0 : i64, tpu.core_type = #tpu.core_type<tc>, window_params = [{transform_indices = @transform_0, window_bounds = array<i64: 128, 256>}, {transform_indices = @transform_1, window_bounds = array<i64: 256, 256>}, {transform_indices = @transform_2, window_bounds = array<i64: 1, 256>}, {transform_indices = @transform_3, window_bounds = array<i64: 128, 256>}]} {
    %c0 = arith.constant 0 : index
    %c0_0 = arith.constant 0 : index
    %0 = vector.load %arg2[%c0, %c0_0] : memref<128x256xbf16, #tpu.memory_space<vmem>>, vector<128x256xbf16>
    %c0_1 = arith.constant 0 : index
    %c0_2 = arith.constant 0 : index
    %1 = vector.load %arg3[%c0_1, %c0_2] : memref<256x256xbf16, #tpu.memory_space<vmem>>, vector<256x256xbf16>
    %cst = arith.constant dense<0.000000e+00> : vector<128x256xf32>
    %2 = tpu.matmul %0, %1, %cst {dimension_numbers = #tpu.dot_dimension_numbers<[1], [0], [0], [1], [0, 0, 1, 1], [], []>} : vector<128x256xbf16>, vector<256x256xbf16>, vector<128x256xf32> -> vector<128x256xf32>
    %c0_3 = arith.constant 0 : index
    %c0_4 = arith.constant 0 : index
    %3 = vector.load %arg4[%c0_3, %c0_4] : memref<1x256xf32, #tpu.memory_space<vmem>>, vector<1x256xf32>
    %4 = vector.broadcast %3 : vector<1x256xf32> to vector<128x256xf32>
    %5 = arith.addf %2, %4 : vector<128x256xf32>
    %c0_5 = arith.constant 0 : index
    %c0_6 = arith.constant 0 : index
    %6 = vector.load %arg5[%c0_5, %c0_6] : memref<128x256xf32, #tpu.memory_space<vmem>>, vector<128x256xf32>
    tpu.vector_store %arg5[%c0_5, %c0_6], %5 {strides = array<i32>} : memref<128x256xf32, #tpu.memory_space<vmem>>, vector<128x256xf32>,
    return
  }
  func.func @transform_0(%arg0: i32, %arg1: i32) -> (i32, i32) {
    %c0_i32 = arith.constant 0 : i32
    %c0_i32_0 = arith.constant 0 : i32
    return %arg1, %c0_i32 : i32, i32
  }
  func.func @transform_1(%arg0: i32, %arg1: i32) -> (i32, i32) {
    %c0_i32 = arith.constant 0 : i32
    %c0_i32_0 = arith.constant 0 : i32
    return %c0_i32, %arg0 : i32, i32
  }
  func.func @transform_2(%arg0: i32, %arg1: i32) -> (i32, i32) {
    %c0_i32 = arith.constant 0 : i32
    %c0_i32_0 = arith.constant 0 : i32
    return %c0_i32, %arg0 : i32, i32
  }
  func.func @transform_3(%arg0: i32, %arg1: i32) -> (i32, i32) {
    %c0_i32 = arith.constant 0 : i32
    return %arg1, %arg0 : i32, i32
  }
}

</mosaic_0001>

<llo_original>
// kernel: tpu_custom_call.1
$region0: #{tpu_custom_call.1}
  #allocation0 [shape = 'u32[]', space=smem, size = 0x4, offset = 0x4, fixed_abs, tag = 'smem constant byte address 0x4 - core index']
  #allocation1 [shape = 'u32[144,128]{1,0:T(1,128)}', space=vmem, size = 0x12000, scoped, tag = 'internal scratch']
  %s0 = inlined_call_operand.hbm [shape: bf16[128,256], index: 0, kind: input, shape index: {}]
  %s1 = inlined_call_operand.hbm [shape: bf16[256,512], index: 1, kind: input, shape index: {}]
  %s2 = inlined_call_operand.vmem [shape: f32[1,512], index: 2, kind: input, shape index: {}]
  %s3 = inlined_call_operand.hbm [shape: f32[128,512], index: 3, kind: output, shape index: {}]
  %s4 = sld [smem:[#allocation0]]
  $region53: #{tpu_custom_call.1} parent=0
    _
  %s6 = ssub.s32 1, %s4
  %s7 = scalar_select 0, %s6, %s4
  $region1: #{tpu_custom_call.1} parent=0
    #allocation2 [shape = 'u8[65536]{0}', space=vmem, size = 0x10000, scoped, tag = 'input window, operand 0, single buffered']
    #allocation3 [shape = 's32[2]{0}', space=sflag, size = 0x8, scoped, tag = 'scoped memory for tpu_custom_call.1']
    #allocation4 [shape = 's32[2]{0}', space=sflag, size = 0x8, scoped, tag = 'scoped memory for tpu_custom_call.1']
    #allocation5 [shape = 'u8[262144]{0}', space=vmem, size = 0x40000, scoped, tag = 'input window, operand 1']
    #allocation6 [shape = 's32[2]{0}', space=sflag, size = 0x8, scoped, tag = 'scoped memory for tpu_custom_call.1']
    #allocation7 [shape = 'u8[262144]{0}', space=vmem, size = 0x40000, scoped, tag = 'output window, operand 0']
    %8 = vsyncpa [#allocation3], 0
    %9 = vsyncpa [#allocation6], 0
    %s10 = scalar_lea.sflag [#allocation6], 1
    %11 = vsyncpa %s10, 0
    %12 = vsyncpa [#allocation4], 0
    %s13 = scalar_lea.sflag [#allocation4], 1
    %14 = vsyncpa %s13, 0
    loop: start=0, step=1, limit=4
    $region2: #{tpu_custom_call.1} parent=1 // loop_pre_header
      _
    $region3: #{tpu_custom_call.1} parent=1 // loop_header
      %s16 = sphi 0, %s20
      %p17 = scmp.ge.s32.totalorder %s16, 4
      %s23 = sphi 0, %s35
      %s24 = sphi 0, %s31
      %s25 = sphi 0, %s23
      %s26 = sphi 0, %s24
      %s27 = sphi 0, %s25
      %s28 = sphi 0, %s26
      %s38 = sphi 0, %s40
      %s41 = sphi 0, %s38
      %s42 = sphi 0, %s41
      %s58 = sphi 0, %s42
      %s64 = sphi 0, %s66
      %s67 = sphi 0, %s64
      %s68 = sphi 0, %s67
      %s84 = sphi 0, %s68
      %s90 = sphi 0, %s92
      %s93 = sphi 0, %s90
      %s94 = sphi 0, %s93
      %s110 = sphi 0, %s94
      %s118 = sphi 0, %s120
      %s121 = sphi 0, %s118
      %s122 = sphi 0, %s121
      %s138 = sphi 0, %s122
    $region4: #{tpu_custom_call.1} parent=1 // loop_header_branch
      %19 = sbr.rel (%p17) target = $region8
    $region5: #{tpu_custom_call.1} parent=1 // loop_body
      %s21 = ssub.s32 %s16, 1
      %s22 = ssub.s32 %s16, 2
      %s29 = sadd.s32 1, %s24
      %p30 = scmp.ge.s32.totalorder %s29, 1
      %s31 = scalar_select %p30, 0, %s29
      %s32 = sadd.s32 1, %s23
      %s33 = scalar_select %p30, %s32, %s23
      %p34 = scmp.ge.s32.totalorder %s33, 2
      %s35 = scalar_select %p34, 0, %s33
      %s36 = ssub.s32 %s24, %s31
      %p37 = scmp.eq.s32.totalorder %s36, 0
      %s39 = sadd.s32 %s38, 1
      %s40 = scalar_select %p37, %s38, %s39
      %p43 = pneg %p37
      %p44 = scmp.eq.s32.totalorder %s16, 1
      %p45 = por %p43, %p44
      %p46 = scmp.ne.s32.totalorder %s38, %s41
      %p47 = scmp.eq.s32.totalorder %s16, 0
      %p48 = por %p46, %p47
      %p49 = scmp.ne.s32.totalorder %s38, %s41
      %p50 = scmp.eq.s32.totalorder %s21, 1
      %p51 = por %p49, %p50
      %p52 = scmp.ne.s32.totalorder %s41, %s42
      %p53 = scmp.eq.s32.totalorder %s21, 0
      %p54 = por %p52, %p53
      %p55 = scmp.ne.s32.totalorder %s41, %s42
      %p56 = scmp.eq.s32.totalorder %s22, 1
      %p57 = por %p55, %p56
      %p59 = scmp.ne.s32.totalorder %s42, %s58
      %p60 = scmp.eq.s32.totalorder %s22, 0
      %p61 = por %p59, %p60
      %s62 = ssub.s32 %s23, %s35
      %p63 = scmp.eq.s32.totalorder %s62, 0
      %s65 = sadd.s32 %s64, 1
      %s66 = scalar_select %p63, %s64, %s65
      %p69 = pneg %p63
      %p70 = scmp.eq.s32.totalorder %s16, 1
      %p71 = por %p69, %p70
      %p72 = scmp.ne.s32.totalorder %s64, %s67
      %p73 = scmp.eq.s32.totalorder %s16, 0
      %p74 = por %p72, %p73
      %p75 = scmp.ne.s32.totalorder %s64, %s67
      %p76 = scmp.eq.s32.totalorder %s21, 1
      %p77 = por %p75, %p76
      %p78 = scmp.ne.s32.totalorder %s67, %s68
      %p79 = scmp.eq.s32.totalorder %s21, 0
      %p80 = por %p78, %p79
      %p81 = scmp.ne.s32.totalorder %s67, %s68
      %p82 = scmp.eq.s32.totalorder %s22, 1
      %p83 = por %p81, %p82
      %p85 = scmp.ne.s32.totalorder %s68, %s84
      %p86 = scmp.eq.s32.totalorder %s22, 0
      %p87 = por %p85, %p86
      %s88 = ssub.s32 %s23, %s35
      %p89 = scmp.eq.s32.totalorder %s88, 0
      %s91 = sadd.s32 %s90, 1
      %s92 = scalar_select %p89, %s90, %s91
      %p95 = pneg %p89
      %p96 = scmp.eq.s32.totalorder %s16, 1
      %p97 = por %p95, %p96
      %p98 = scmp.ne.s32.totalorder %s90, %s93
      %p99 = scmp.eq.s32.totalorder %s16, 0
      %p100 = por %p98, %p99
      %p101 = scmp.ne.s32.totalorder %s90, %s93
      %p102 = scmp.eq.s32.totalorder %s21, 1
      %p103 = por %p101, %p102
      %p104 = scmp.ne.s32.totalorder %s93, %s94
      %p105 = scmp.eq.s32.totalorder %s21, 0
      %p106 = por %p104, %p105
      %p107 = scmp.ne.s32.totalorder %s93, %s94
      %p108 = scmp.eq.s32.totalorder %s22, 1
      %p109 = por %p107, %p108
      %p111 = scmp.ne.s32.totalorder %s94, %s110
      %p112 = scmp.eq.s32.totalorder %s22, 0
      %p113 = por %p111, %p112
      %s114 = ssub.s32 %s24, %s31
      %s115 = ssub.s32 %s23, %s35
      %s116 = sor.u32 %s114, %s115
      %p117 = scmp.eq.s32.totalorder %s116, 0
      %s119 = sadd.s32 %s118, 1
      %s120 = scalar_select %p117, %s118, %s119
      %p123 = pneg %p117
      %p124 = scmp.eq.s32.totalorder %s16, 1
      %p125 = por %p123, %p124
      %p126 = scmp.ne.s32.totalorder %s118, %s121
      %p127 = scmp.eq.s32.totalorder %s16, 0
      %p128 = por %p126, %p127
      %p129 = scmp.ne.s32.totalorder %s118, %s121
      %p130 = scmp.eq.s32.totalorder %s21, 1
      %p131 = por %p129, %p130
      %p132 = scmp.ne.s32.totalorder %s121, %s122
      %p133 = scmp.eq.s32.totalorder %s21, 0
      %p134 = por %p132, %p133
      %p135 = scmp.ne.s32.totalorder %s121, %s122
      %p136 = scmp.eq.s32.totalorder %s22, 1
      %p137 = por %p135, %p136
      %p139 = scmp.ne.s32.totalorder %s122, %s138
      %p140 = scmp.eq.s32.totalorder %s22, 0
      %p141 = por %p139, %p140
      %p142 = scmp.le.s32.totalorder 1, %s16
      %p143 = scmp.lt.s32.totalorder %s16, 3
      %p144 = pnand %p142, %p143
      %p145 = pneg %p144
      // Predicated region
      $region9: #{tpu_custom_call.1} parent=5 // pred_check
        _
      $region10: #{tpu_custom_call.1} parent=5 // pred_check_branch
        %147 = sbr.rel (%p144) target = $region12
      $region11: #{tpu_custom_call.1} parent=5 // pred_region
        %s148 = ssub.s32 %s16, 1
        // Predicated region
        $region13: #{tpu_custom_call.1} parent=11 // pred_check
          %p149 = pneg %p54
        $region14: #{tpu_custom_call.1} parent=11 // pred_check_branch
          %151 = sbr.rel (%p149) target = $region16
        $region15: #{tpu_custom_call.1} parent=11 // pred_region
          %s152 = smul.u32 16, %s26
          %s154 = ssub.s32 2048, 2048
          %155 = vsyncadd [#allocation3], %s154
          %s156 = smul.addr %s152, 2
          %s157 = smul.addr %s156, 64
          %s158 = scalar_lea.hbm %s0, %s157
          %s159 = sshll.u32 [#allocation2], 4
          %s160 = int_to_ptr.vmem [resolvable:$true] %s159
          %165 = dma.hbm_to_vmem [thread:$0]  %s158, 2048, %s160, [#allocation3], 128, 128, 8
        $region16: #{tpu_custom_call.1} parent=11 // pred_fallthru
          _
      $region12: #{tpu_custom_call.1} parent=5 // pred_fallthru
        _
      %p166 = scmp.lt.s32.totalorder %s16, 2
      // Predicated region
      $region17: #{tpu_custom_call.1} parent=5 // pred_check
        %p167 = pneg %p166
      $region18: #{tpu_custom_call.1} parent=5 // pred_check_branch
        %169 = sbr.rel (%p167) target = $region20
      $region19: #{tpu_custom_call.1} parent=5 // pred_region
        // Predicated region
        $region21: #{tpu_custom_call.1} parent=19 // pred_check
          %p170 = pneg %p74
        $region22: #{tpu_custom_call.1} parent=19 // pred_check_branch
          %172 = sbr.rel (%p170) target = $region24
        $region23: #{tpu_custom_call.1} parent=19 // pred_region
          %s173 = sand.u32 %s64, 1
          %s174 = scalar_lea.sflag [#allocation6], %s173
          %s175 = sand.u32 %s64, 1
          %s176 = smul.addr %s175, 256
          %s177 = scalar_lea.vmem [#allocation5], %s176
          %s178 = smul.u32 2, %s23
          %s180 = ssub.s32 4096, 4096
          %181 = vsyncadd %s174, %s180
          %s182 = smul.addr %s178, 64
          %s183 = scalar_lea.hbm %s1, %s182
          %s184 = sshll.u32 %s177, 4
          %s185 = int_to_ptr.vmem [resolvable:$true] %s184
          %190 = dma.hbm_to_vmem [thread:$0]  %s183, 4096, %s185, %s174, 256, 128, 8
        $region24: #{tpu_custom_call.1} parent=19 // pred_fallthru
          _
        // Predicated region
        $region25: #{tpu_custom_call.1} parent=19 // pred_check
          %p191 = pneg %p100
        $region26: #{tpu_custom_call.1} parent=19 // pred_check_branch
          %193 = sbr.rel (%p191) target = $region28
        $region27: #{tpu_custom_call.1} parent=19 // pred_region
          %s194 = smul.u32 2, %s23
          %p195 = scmp.lt.s32.totalorder %s194, 3
          %s196 = scalar_select %p195, %s194, 3
          %s197 = scalar_lea.vmem %s2, %s196
          %s198 = smul.u32 2, %s23
        $region28: #{tpu_custom_call.1} parent=19 // pred_fallthru
          _
      $region20: #{tpu_custom_call.1} parent=5 // pred_fallthru
        _
      %p199 = scmp.le.s32.totalorder 1, %s16
      %p200 = scmp.lt.s32.totalorder %s16, 3
      %p201 = pnand %p199, %p200
      %p202 = pneg %p201
      // Predicated region
      $region29: #{tpu_custom_call.1} parent=5 // pred_check
        _
      $region30: #{tpu_custom_call.1} parent=5 // pred_check_branch
        %204 = sbr.rel (%p201) target = $region32
      $region31: #{tpu_custom_call.1} parent=5 // pred_region
        %s205 = ssub.s32 %s16, 1
        // Predicated region
        $region33: #{tpu_custom_call.1} parent=31 // pred_check
          %p206 = pneg %p54
        $region34: #{tpu_custom_call.1} parent=31 // pred_check_branch
          %208 = sbr.rel (%p206) target = $region36
        $region35: #{tpu_custom_call.1} parent=31 // pred_region
          %209 = dma.done [#allocation3], 2048
        $region36: #{tpu_custom_call.1} parent=31 // pred_fallthru
          _
        %s210 = sand.u32 %s67, 1
        %s211 = scalar_lea.sflag [#allocation6], %s210
        %s212 = sand.u32 %s67, 1
        %s213 = smul.addr %s212, 256
        %s214 = scalar_lea.vmem [#allocation5], %s213
        // Predicated region
        $region37: #{tpu_custom_call.1} parent=31 // pred_check
          %p215 = pneg %p80
        $region38: #{tpu_custom_call.1} parent=31 // pred_check_branch
          %217 = sbr.rel (%p215) target = $region40
        $region39: #{tpu_custom_call.1} parent=31 // pred_region
          %218 = dma.done %s211, 4096
        $region40: #{tpu_custom_call.1} parent=31 // pred_fallthru
          _
        %p219 = pneg %p54
        %p220 = pneg %p51
        %s221 = sand.u32 %s67, 1
        %s222 = scalar_lea.sflag [#allocation6], %s221
        %s223 = sand.u32 %s67, 1
        %s224 = smul.addr %s223, 256
        %s225 = scalar_lea.vmem [#allocation5], %s224
        %p226 = pneg %p80
        %p227 = pneg %p77
        %s228 = smul.u32 2, %s25
        %p229 = scmp.lt.s32.totalorder %s228, 3
        %s230 = scalar_select %p229, %s228, 3
        %s231 = scalar_lea.vmem %s2, %s230
        %p232 = pneg %p106
        %p233 = pneg %p103
        %p234 = pneg %p134
        %p235 = pneg %p131
        %s236 = sand.u32 %s121, 1
        %s237 = scalar_lea.sflag [#allocation4], %s236
        %s238 = sand.u32 %s121, 1
        %s239 = smul.addr %s238, 256
        %s240 = scalar_lea.vmem [#allocation7], %s239
        %s241 = smul.u32 16, %s26
        %s242 = smul.u32 2, %s25
        %s243 = smul.u32 2, %s25
        %p244 = scmp.lt.s32.totalorder %s243, 3
        %s245 = scalar_select %p244, %s243, 3
        %s246 = scalar_lea.vmem %s2, %s245
        %s247 = smul.u32 2, %s25
        %s248 = smul.u32 16, %s26
        %s249 = smul.u32 2, %s25
        %v250 = vld [vmem:[#allocation2] sm:$0xff]
        %v251 = vld [vmem:[#allocation2 + $0x8] sm:$0xff]
        %v252 = vld [vmem:[#allocation2 + $0x10] sm:$0xff]
        %v253 = vld [vmem:[#allocation2 + $0x18] sm:$0xff]
        %v254 = vld [vmem:[#allocation2 + $0x20] sm:$0xff]
        %v255 = vld [vmem:[#allocation2 + $0x28] sm:$0xff]
        %v256 = vld [vmem:[#allocation2 + $0x30] sm:$0xff]
        %v257 = vld [vmem:[#allocation2 + $0x38] sm:$0xff]
        %v258 = vld [vmem:[#allocation2 + $0x40] sm:$0xff]
        %v259 = vld [vmem:[#allocation2 + $0x48] sm:$0xff]
        %v260 = vld [vmem:[#allocation2 + $0x50] sm:$0xff]
        %v261 = vld [vmem:[#allocation2 + $0x58] sm:$0xff]
        %v262 = vld [vmem:[#allocation2 + $0x60] sm:$0xff]
        %v263 = vld [vmem:[#allocation2 + $0x68] sm:$0xff]
        %v264 = vld [vmem:[#allocation2 + $0x70] sm:$0xff]
        %v265 = vld [vmem:[#allocation2 + $0x78] sm:$0xff]
        %v266 = vld [vmem:[%s214] sm:$0xff]
        %v267 = vld [vmem:[%s214 + $0x8] sm:$0xff]
        %v268 = vld [vmem:[%s214 + $0x10] sm:$0xff]
        %v269 = vld [vmem:[%s214 + $0x18] sm:$0xff]
        %v270 = vld [vmem:[%s214 + $0x20] sm:$0xff]
        %v271 = vld [vmem:[%s214 + $0x28] sm:$0xff]
        %v272 = vld [vmem:[%s214 + $0x30] sm:$0xff]
        %v273 = vld [vmem:[%s214 + $0x38] sm:$0xff]
        %v274 = vld [vmem:[%s214 + $0x40] sm:$0xff]
        %v275 = vld [vmem:[%s214 + $0x48] sm:$0xff]
        %v276 = vld [vmem:[%s214 + $0x50] sm:$0xff]
        %v277 = vld [vmem:[%s214 + $0x58] sm:$0xff]
        %v278 = vld [vmem:[%s214 + $0x60] sm:$0xff]
        %v279 = vld [vmem:[%s214 + $0x68] sm:$0xff]
        %v280 = vld [vmem:[%s214 + $0x70] sm:$0xff]
        %v281 = vld [vmem:[%s214 + $0x78] sm:$0xff]
        %v282 = vld [vmem:[%s214 + $0x80] sm:$0xff]
        %v283 = vld [vmem:[%s214 + $0x88] sm:$0xff]
        %v284 = vld [vmem:[%s214 + $0x90] sm:$0xff]
        %v285 = vld [vmem:[%s214 + $0x98] sm:$0xff]
        %v286 = vld [vmem:[%s214 + $0xa0] sm:$0xff]
        %v287 = vld [vmem:[%s214 + $0xa8] sm:$0xff]
        %v288 = vld [vmem:[%s214 + $0xb0] sm:$0xff]
        %v289 = vld [vmem:[%s214 + $0xb8] sm:$0xff]
        %v290 = vld [vmem:[%s214 + $0xc0] sm:$0xff]
        %v291 = vld [vmem:[%s214 + $0xc8] sm:$0xff]
        %v292 = vld [vmem:[%s214 + $0xd0] sm:$0xff]
        %v293 = vld [vmem:[%s214 + $0xd8] sm:$0xff]
        %v294 = vld [vmem:[%s214 + $0xe0] sm:$0xff]
        %v295 = vld [vmem:[%s214 + $0xe8] sm:$0xff]
        %v296 = vld [vmem:[%s214 + $0xf0] sm:$0xff]
        %v297 = vld [vmem:[%s214 + $0xf8] sm:$0xff]
        %v298 = vld [vmem:[%s246] sm:$0x3]
        %v300 = vlaneseq
        %v301 = vshrl.u32 %v300, 7
        %v302 = vsub.s32 0, %v301
        %v303 = vrot.slane %v298, %v302
        %v304 = vlaneseq
        %v305 = vshrl.u32 %v304, 7
        %v306 = vsub.s32 1, %v305
        %v307 = vrot.slane %v298, %v306
        %v326 = vunpack.c.l.b16 %v250
        %v327 = vunpack.c.h.b16 %v250
        %v328 = vunpack.c.l.b16 %v251
        %v329 = vunpack.c.h.b16 %v251
        %v330 = vunpack.c.l.b16 %v252
        %v331 = vunpack.c.h.b16 %v252
        %v332 = vunpack.c.l.b16 %v253
        %v333 = vunpack.c.h.b16 %v253
        %v334 = vunpack.c.l.b16 %v254
        %v335 = vunpack.c.h.b16 %v254
        %v336 = vunpack.c.l.b16 %v255
        %v337 = vunpack.c.h.b16 %v255
        %v338 = vunpack.c.l.b16 %v256
        %v339 = vunpack.c.h.b16 %v256
        %v340 = vunpack.c.l.b16 %v257
        %v341 = vunpack.c.h.b16 %v257
        %v342 = vunpack.c.l.b16 %v258
        %v343 = vunpack.c.h.b16 %v258
        %v344 = vunpack.c.l.b16 %v259
        %v345 = vunpack.c.h.b16 %v259
        %v346 = vunpack.c.l.b16 %v260
        %v347 = vunpack.c.h.b16 %v260
        %v348 = vunpack.c.l.b16 %v261
        %v349 = vunpack.c.h.b16 %v261
        %v350 = vunpack.c.l.b16 %v262
        %v351 = vunpack.c.h.b16 %v262
        %v352 = vunpack.c.l.b16 %v263
        %v353 = vunpack.c.h.b16 %v263
        %v354 = vunpack.c.l.b16 %v264
        %v355 = vunpack.c.h.b16 %v264
        %v356 = vunpack.c.l.b16 %v265
        %v357 = vunpack.c.h.b16 %v265
        %v358 = vpack.c.b16 %v328, %v326
        %v359 = vpack.c.b16 %v329, %v327
        %v360 = vpack.c.b16 %v332, %v330
        %v361 = vpack.c.b16 %v333, %v331
        %v362 = vpack.c.b16 %v336, %v334
        %v363 = vpack.c.b16 %v337, %v335
        %v364 = vpack.c.b16 %v340, %v338
        %v365 = vpack.c.b16 %v341, %v339
        %v366 = vpack.c.b16 %v344, %v342
        %v367 = vpack.c.b16 %v345, %v343
        %v368 = vpack.c.b16 %v348, %v346
        %v369 = vpack.c.b16 %v349, %v347
        %v370 = vpack.c.b16 %v352, %v350
        %v371 = vpack.c.b16 %v353, %v351
        %v372 = vpack.c.b16 %v356, %v354
        %v373 = vpack.c.b16 %v357, %v355
        %v422 = vunpack.c.l.b16 %v266
        %v423 = vunpack.c.h.b16 %v266
        %v424 = vunpack.c.l.b16 %v267
        %v425 = vunpack.c.h.b16 %v267
        %v426 = vunpack.c.l.b16 %v268
        %v427 = vunpack.c.h.b16 %v268
        %v428 = vunpack.c.l.b16 %v269
        %v429 = vunpack.c.h.b16 %v269
        %v430 = vunpack.c.l.b16 %v270
        %v431 = vunpack.c.h.b16 %v270
        %v432 = vunpack.c.l.b16 %v271
        %v433 = vunpack.c.h.b16 %v271
        %v434 = vunpack.c.l.b16 %v272
        %v435 = vunpack.c.h.b16 %v272
        %v436 = vunpack.c.l.b16 %v273
        %v437 = vunpack.c.h.b16 %v273
        %v438 = vunpack.c.l.b16 %v274
        %v439 = vunpack.c.h.b16 %v274
        %v440 = vunpack.c.l.b16 %v275
        %v441 = vunpack.c.h.b16 %v275
        %v442 = vunpack.c.l.b16 %v276
        %v443 = vunpack.c.h.b16 %v276
        %v444 = vunpack.c.l.b16 %v277
        %v445 = vunpack.c.h.b16 %v277
        %v446 = vunpack.c.l.b16 %v278
        %v447 = vunpack.c.h.b16 %v278
        %v448 = vunpack.c.l.b16 %v279
        %v449 = vunpack.c.h.b16 %v279
        %v450 = vunpack.c.l.b16 %v280
        %v451 = vunpack.c.h.b16 %v280
        %v452 = vunpack.c.l.b16 %v281
        %v453 = vunpack.c.h.b16 %v281
        %v454 = vunpack.c.l.b16 %v282
        %v455 = vunpack.c.h.b16 %v282
        %v456 = vunpack.c.l.b16 %v283
        %v457 = vunpack.c.h.b16 %v283
        %v458 = vunpack.c.l.b16 %v284
        %v459 = vunpack.c.h.b16 %v284
        %v460 = vunpack.c.l.b16 %v285
        %v461 = vunpack.c.h.b16 %v285
        %v462 = vunpack.c.l.b16 %v286
        %v463 = vunpack.c.h.b16 %v286
        %v464 = vunpack.c.l.b16 %v287
        %v465 = vunpack.c.h.b16 %v287
        %v466 = vunpack.c.l.b16 %v288
        %v467 = vunpack.c.h.b16 %v288
        %v468 = vunpack.c.l.b16 %v289
        %v469 = vunpack.c.h.b16 %v289
        %v470 = vunpack.c.l.b16 %v290
        %v471 = vunpack.c.h.b16 %v290
        %v472 = vunpack.c.l.b16 %v291
        %v473 = vunpack.c.h.b16 %v291
        %v474 = vunpack.c.l.b16 %v292
        %v475 = vunpack.c.h.b16 %v292
        %v476 = vunpack.c.l.b16 %v293
        %v477 = vunpack.c.h.b16 %v293
        %v478 = vunpack.c.l.b16 %v294
        %v479 = vunpack.c.h.b16 %v294
        %v480 = vunpack.c.l.b16 %v295
        %v481 = vunpack.c.h.b16 %v295
        %v482 = vunpack.c.l.b16 %v296
        %v483 = vunpack.c.h.b16 %v296
        %v484 = vunpack.c.l.b16 %v297
        %v485 = vunpack.c.h.b16 %v297
        %v486 = vpack.c.b16 %v424, %v422
        %v487 = vpack.c.b16 %v425, %v423
        %v488 = vpack.c.b16 %v428, %v426
        %v489 = vpack.c.b16 %v429, %v427
        %v490 = vpack.c.b16 %v432, %v430
        %v491 = vpack.c.b16 %v433, %v431
        %v492 = vpack.c.b16 %v436, %v434
        %v493 = vpack.c.b16 %v437, %v435
        %v494 = vpack.c.b16 %v440, %v438
        %v495 = vpack.c.b16 %v441, %v439
        %v496 = vpack.c.b16 %v444, %v442
        %v497 = vpack.c.b16 %v445, %v443
        %v498 = vpack.c.b16 %v448, %v446
        %v499 = vpack.c.b16 %v449, %v447
        %v500 = vpack.c.b16 %v452, %v450
        %v501 = vpack.c.b16 %v453, %v451
        %v502 = vpack.c.b16 %v456, %v454
        %v503 = vpack.c.b16 %v457, %v455
        %v504 = vpack.c.b16 %v460, %v458
        %v505 = vpack.c.b16 %v461, %v459
        %v506 = vpack.c.b16 %v464, %v462
        %v507 = vpack.c.b16 %v465, %v463
        %v508 = vpack.c.b16 %v468, %v466
        %v509 = vpack.c.b16 %v469, %v467
        %v510 = vpack.c.b16 %v472, %v470
        %v511 = vpack.c.b16 %v473, %v471
        %v512 = vpack.c.b16 %v476, %v474
        %v513 = vpack.c.b16 %v477, %v475
        %v514 = vpack.c.b16 %v480, %v478
        %v515 = vpack.c.b16 %v481, %v479
        %v516 = vpack.c.b16 %v484, %v482
        %v517 = vpack.c.b16 %v485, %v483
        %550 = vmatprep.subr.bf16.mxu0 %v487
        %551 = vmatpush1.bf16.msra.mxu0 %v486
        %552 = vmatprep.subr.bf16.mxu0 %v489
        %553 = vmatpush1.bf16.msra.mxu0 %v488
        %554 = vmatprep.subr.bf16.mxu0 %v491
        %555 = vmatpush1.bf16.msra.mxu0 %v490
        %556 = vmatprep.subr.bf16.mxu0 %v493
        %557 = vmatpush1.bf16.msra.mxu0 %v492
        %558 = vmatprep.subr.bf16.mxu0 %v495
        %559 = vmatpush1.bf16.msra.mxu0 %v494
        %560 = vmatprep.subr.bf16.mxu0 %v497
        %561 = vmatpush1.bf16.msra.mxu0 %v496
        %562 = vmatprep.subr.bf16.mxu0 %v499
        %563 = vmatpush1.bf16.msra.mxu0 %v498
        %564 = vmatprep.subr.bf16.mxu0 %v501
        %565 = vmatpush1.bf16.msra.mxu0 %v500
        %566 = vmatprep.subr.bf16.mxu0 %v503
        %567 = vmatpush1.bf16.msra.mxu0 %v502
        %568 = vmatprep.subr.bf16.mxu0 %v505
        %569 = vmatpush1.bf16.msra.mxu0 %v504
        %570 = vmatprep.subr.bf16.mxu0 %v507
        %571 = vmatpush1.bf16.msra.mxu0 %v506
        %572 = vmatprep.subr.bf16.mxu0 %v509
        %573 = vmatpush1.bf16.msra.mxu0 %v508
        %574 = vmatprep.subr.bf16.mxu0 %v511
        %575 = vmatpush1.bf16.msra.mxu0 %v510
        %576 = vmatprep.subr.bf16.mxu0 %v513
        %577 = vmatpush1.bf16.msra.mxu0 %v512
        %578 = vmatprep.subr.bf16.mxu0 %v515
        %579 = vmatpush1.bf16.msra.mxu0 %v514
        %580 = vmatprep.subr.bf16.mxu0 %v517
        %581 = vmatpush1.bf16.msra.mxu0 %v516
        %582 = vmatprep.mubr.bf16.mxu0 %v359
        %583 = vmatmul.mubr.bf16.gmra.mrb[0].mxu0 %v358
        %v584 = vpop.f32.mrb[0].mxu0
        %v585 = vadd.f32 %v303, %v584
        %v586 = vpop.f32.mrb[0].mxu0
        %v587 = vadd.f32 %v307, %v586
        %v588 = vpop.f32.mrb[0].mxu0
        %v589 = vadd.f32 %v303, %v588
        %v590 = vpop.f32.mrb[0].mxu0
        %v591 = vadd.f32 %v307, %v590
        %592 = vmatprep.mubr.bf16.mxu0 %v361
        %593 = vmatmul.mubr.bf16.gmra.mrb[0].mxu0 %v360
        %v594 = vpop.f32.mrb[0].mxu0
        %v595 = vadd.f32 %v303, %v594
        %v596 = vpop.f32.mrb[0].mxu0
        %v597 = vadd.f32 %v307, %v596
        %v598 = vpop.f32.mrb[0].mxu0
        %v599 = vadd.f32 %v303, %v598
        %v600 = vpop.f32.mrb[0].mxu0
        %v601 = vadd.f32 %v307, %v600
        %602 = vmatprep.mubr.bf16.mxu0 %v363
        %603 = vmatmul.mubr.bf16.gmra.mrb[0].mxu0 %v362
        %v604 = vpop.f32.mrb[0].mxu0
        %v605 = vadd.f32 %v303, %v604
        %v606 = vpop.f32.mrb[0].mxu0
        %v607 = vadd.f32 %v307, %v606
        %v608 = vpop.f32.mrb[0].mxu0
        %v609 = vadd.f32 %v303, %v608
        %v610 = vpop.f32.mrb[0].mxu0
        %v611 = vadd.f32 %v307, %v610
        %612 = vmatprep.mubr.bf16.mxu0 %v365
        %613 = vmatmul.mubr.bf16.gmra.mrb[0].mxu0 %v364
        %v614 = vpop.f32.mrb[0].mxu0
        %v615 = vadd.f32 %v303, %v614
        %v616 = vpop.f32.mrb[0].mxu0
        %v617 = vadd.f32 %v307, %v616
        %v618 = vpop.f32.mrb[0].mxu0
        %v619 = vadd.f32 %v303, %v618
        %v620 = vpop.f32.mrb[0].mxu0
        %v621 = vadd.f32 %v307, %v620
        %622 = vmatprep.mubr.bf16.mxu0 %v367
        %623 = vmatmul.mubr.bf16.gmra.mrb[0].mxu0 %v366
        %v624 = vpop.f32.mrb[0].mxu0
        %v625 = vadd.f32 %v303, %v624
        %v626 = vpop.f32.mrb[0].mxu0
        %v627 = vadd.f32 %v307, %v626
        %v628 = vpop.f32.mrb[0].mxu0
        %v629 = vadd.f32 %v303, %v628
        %v630 = vpop.f32.mrb[0].mxu0
        %v631 = vadd.f32 %v307, %v630
        %632 = vmatprep.mubr.bf16.mxu0 %v369
        %633 = vmatmul.mubr.bf16.gmra.mrb[0].mxu0 %v368
        %v634 = vpop.f32.mrb[0].mxu0
        %v635 = vadd.f32 %v303, %v634
        %v636 = vpop.f32.mrb[0].mxu0
        %v637 = vadd.f32 %v307, %v636
        %v638 = vpop.f32.mrb[0].mxu0
        %v639 = vadd.f32 %v303, %v638
        %v640 = vpop.f32.mrb[0].mxu0
        %v641 = vadd.f32 %v307, %v640
        %642 = vmatprep.mubr.bf16.mxu0 %v371
        %643 = vmatmul.mubr.bf16.gmra.mrb[0].mxu0 %v370
        %v644 = vpop.f32.mrb[0].mxu0
        %v645 = vadd.f32 %v303, %v644
        %v646 = vpop.f32.mrb[0].mxu0
        %v647 = vadd.f32 %v307, %v646
        %v648 = vpop.f32.mrb[0].mxu0
        %v649 = vadd.f32 %v303, %v648
        %v650 = vpop.f32.mrb[0].mxu0
        %v651 = vadd.f32 %v307, %v650
        %652 = vmatprep.mubr.bf16.mxu0 %v373
        %653 = vmatmul.mubr.bf16.gmra.mrb[0].mxu0 %v372
        %v654 = vpop.f32.mrb[0].mxu0
        %v655 = vadd.f32 %v303, %v654
        %v656 = vpop.f32.mrb[0].mxu0
        %v657 = vadd.f32 %v307, %v656
        %v658 = vpop.f32.mrb[0].mxu0
        %v659 = vadd.f32 %v303, %v658
        %v660 = vpop.f32.mrb[0].mxu0
        %v661 = vadd.f32 %v307, %v660
        %662 = vdwg.mxu0
        %663 = vst [vmem:[%s240] sm:$0xff] %v585
        %664 = vst [vmem:[%s240 + $0x8] sm:$0xff] %v587
        %665 = vst [vmem:[%s240 + $0x10] sm:$0xff] %v589
        %666 = vst [vmem:[%s240 + $0x18] sm:$0xff] %v591
        %667 = vst [vmem:[%s240 + $0x20] sm:$0xff] %v595
        %668 = vst [vmem:[%s240 + $0x28] sm:$0xff] %v597
        %669 = vst [vmem:[%s240 + $0x30] sm:$0xff] %v599
        %670 = vst [vmem:[%s240 + $0x38] sm:$0xff] %v601
        %671 = vst [vmem:[%s240 + $0x40] sm:$0xff] %v605
        %672 = vst [vmem:[%s240 + $0x48] sm:$0xff] %v607
        %673 = vst [vmem:[%s240 + $0x50] sm:$0xff] %v609
        %674 = vst [vmem:[%s240 + $0x58] sm:$0xff] %v611
        %675 = vst [vmem:[%s240 + $0x60] sm:$0xff] %v615
        %676 = vst [vmem:[%s240 + $0x68] sm:$0xff] %v617
        %677 = vst [vmem:[%s240 + $0x70] sm:$0xff] %v619
        %678 = vst [vmem:[%s240 + $0x78] sm:$0xff] %v621
        %679 = vst [vmem:[%s240 + $0x80] sm:$0xff] %v625
        %680 = vst [vmem:[%s240 + $0x88] sm:$0xff] %v627
        %681 = vst [vmem:[%s240 + $0x90] sm:$0xff] %v629
        %682 = vst [vmem:[%s240 + $0x98] sm:$0xff] %v631
        %683 = vst [vmem:[%s240 + $0xa0] sm:$0xff] %v635
        %684 = vst [vmem:[%s240 + $0xa8] sm:$0xff] %v637
        %685 = vst [vmem:[%s240 + $0xb0] sm:$0xff] %v639
        %686 = vst [vmem:[%s240 + $0xb8] sm:$0xff] %v641
        %687 = vst [vmem:[%s240 + $0xc0] sm:$0xff] %v645
        %688 = vst [vmem:[%s240 + $0xc8] sm:$0xff] %v647
        %689 = vst [vmem:[%s240 + $0xd0] sm:$0xff] %v649
        %690 = vst [vmem:[%s240 + $0xd8] sm:$0xff] %v651
        %691 = vst [vmem:[%s240 + $0xe0] sm:$0xff] %v655
        %692 = vst [vmem:[%s240 + $0xe8] sm:$0xff] %v657
        %693 = vst [vmem:[%s240 + $0xf0] sm:$0xff] %v659
        %694 = vst [vmem:[%s240 + $0xf8] sm:$0xff] %v661
        %s695 = sand.u32 %s121, 1
        %s696 = scalar_lea.sflag [#allocation4], %s695
        %s697 = sand.u32 %s121, 1
        %s698 = smul.addr %s697, 256
        %s699 = scalar_lea.vmem [#allocation7], %s698
        // Predicated region
        $region41: #{tpu_custom_call.1} parent=31 // pred_check
          %p700 = pneg %p131
        $region42: #{tpu_custom_call.1} parent=31 // pred_check_branch
          %702 = sbr.rel (%p700) target = $region44
        $region43: #{tpu_custom_call.1} parent=31 // pred_region
          %s703 = smul.u32 16, %s26
          %s704 = smul.u32 2, %s25
          %s706 = ssub.s32 4096, 4096
          %707 = vsyncadd %s696, %s706
          %s708 = smul.addr %s703, 4
          %s709 = sadd.s32 %s704, %s708
          %s710 = smul.addr %s709, 128
          %s711 = scalar_lea.hbm %s3, %s710
          %s712 = sshll.u32 %s699, 4
          %s713 = int_to_ptr.vmem [resolvable:$true] %s712
          %718 = dma.vmem_to_hbm [thread:$0]  %s713, 4096, %s711, %s696, 256, 512, 16
        $region44: #{tpu_custom_call.1} parent=31 // pred_fallthru
          _
      $region32: #{tpu_custom_call.1} parent=5 // pred_fallthru
        _
      %p719 = scmp.le.s32.totalorder 2, %s16
      // Predicated region
      $region45: #{tpu_custom_call.1} parent=5 // pred_check
        %p720 = pneg %p719
      $region46: #{tpu_custom_call.1} parent=5 // pred_check_branch
        %722 = sbr.rel (%p720) target = $region48
      $region47: #{tpu_custom_call.1} parent=5 // pred_region
        %s723 = ssub.s32 %s16, 2
        // Predicated region
        $region49: #{tpu_custom_call.1} parent=47 // pred_check
          %p724 = pneg %p137
        $region50: #{tpu_custom_call.1} parent=47 // pred_check_branch
          %726 = sbr.rel (%p724) target = $region52
        $region51: #{tpu_custom_call.1} parent=47 // pred_region
          %s727 = sand.u32 %s122, 1
          %s728 = scalar_lea.sflag [#allocation4], %s727
          %s729 = sand.u32 %s122, 1
          %s730 = smul.addr %s729, 256
          %s731 = scalar_lea.vmem [#allocation7], %s730
          %732 = dma.done %s728, 4096
        $region52: #{tpu_custom_call.1} parent=47 // pred_fallthru
          _
      $region48: #{tpu_custom_call.1} parent=5 // pred_fallthru
        _
    $region6: #{tpu_custom_call.1} parent=1 // loop_footer
      %s20 = sadd.s32 1, %s16
    $region7: #{tpu_custom_call.1} parent=1 // loop_footer_branch
      %15 = sbr.rel target = $region3
    $region8: #{tpu_custom_call.1} parent=1 // loop_exit
      _
    %733 = vsyncpa [#allocation3], 1
    %s734 = scalar_lea.sflag [#allocation3], 1
    %735 = vsyncpa %s734, 1
    %736 = vsyncpa [#allocation6], 1
    %s737 = scalar_lea.sflag [#allocation6], 1
    %738 = vsyncpa %s737, 1
    %739 = vsyncpa [#allocation4], 1
    %s740 = scalar_lea.sflag [#allocation4], 1
    %741 = vsyncpa %s740, 1

</llo_original>
